<compile_context>
chip_gen: v6e
topology: v6e:2x2x1
jax: 0.10.0
libtpu: 0.0.40
codegen_flags: <defaults>
</compile_context>

<pallas_src>
import jax
import jax.numpy as jnp
from jax import lax
from jax.experimental import pallas as pl
from jax.experimental.pallas import tpu as pltpu

BATCH = 2
FEAT = 20

# Row offsets inside the packed parameter block (8-sublane aligned).
W2_ROW = 0      # fused weight  W.T @ rand_weight   (20 rows)
WT_ROW = 24     # W.T                               (20 rows)
C2_ROW = 48     # fused bias    b @ rand_weight + 1 (1 row)
B_ROW = 56      # bias b                            (1 row)
PACK_ROWS = 64


def fixed_hidden_mlp_kernel(x_ref, p_ref, out_ref):
    x = x_ref[...]                                   # (2, 20)  f32

    w2 = p_ref[W2_ROW:W2_ROW + FEAT, :]              # (20, 20) fused W.T @ rw
    wt = p_ref[WT_ROW:WT_ROW + FEAT, :]              # (20, 20) W.T
    c2 = p_ref[C2_ROW:C2_ROW + 1, :]                 # (1, 20)  b @ rw + 1
    b = p_ref[B_ROW:B_ROW + 1, :]                    # (1, 20)  b

    # relu((x@Wt + b) @ rw + 1)  ==  relu(x @ (Wt@rw) + (b@rw + 1))
    h2 = jnp.maximum(
        jnp.dot(x, w2, preferred_element_type=jnp.float32) + c2, 0.0
    )
    # X = self.linear(X)   (shared weights)
    h3 = jnp.dot(h2, wt, preferred_element_type=jnp.float32) + b    # (2, 20)

    # Fused tail reduction: one lane-direction reduce over [h3 ; |h3|],
    # then two sublane adds -> sum and abs-sum.
    stacked = jnp.concatenate([h3, jnp.abs(h3)], axis=0)            # (4, 20)
    rows = jnp.sum(stacked, axis=1, keepdims=True)                  # (4, 1)
    s_sum = rows[0:1, :] + rows[1:2, :]                             # (1, 1)
    s_abs = rows[2:3, :] + rows[3:4, :]                             # (1, 1)

    # while X.abs().sum() > 1: X /= 2
    # Halving is exact in f32, so the loop collapses to scaling by 2^-n where n
    # is the smallest n >= 0 with s_abs <= 2^n. Extract n directly from the
    # float bits: for s_abs > 1, n = unbiased_exponent + (mantissa != 0).
    # (NaN propagates like the reference; +inf abs-sum is a non-terminating
    #  reference loop — degenerate case, returns inf here.)
    bits = pltpu.bitcast(s_abs, jnp.int32)           # sign bit is 0 (s_abs >= 0)
    e = (bits >> 23) - 127                           # unbiased exponent
    mant_nz = ((bits & 0x7FFFFF) != 0).astype(jnp.int32)
    n = jnp.where(s_abs > 1.0, e + mant_nz, 0)       # halving count, 0..128
    # Apply as two normal power-of-two factors (each exponent <= 64) so no
    # sub-normal scale constant is ever built, even for near-max abs-sums.
    n1 = n >> 1
    n2 = n - n1
    scale1 = pltpu.bitcast((127 - n1) << 23, jnp.float32)           # 2^-n1
    scale2 = pltpu.bitcast((127 - n2) << 23, jnp.float32)           # 2^-n2
    res = (s_sum * scale1) * scale2                                  # (1, 1)

    out_ref[0] = res[0, 0]


def prepare_params(w, b, rand_weight):
    """One-time parameter prep + packing (hoisted out of the per-call path).

    w: (20,20) torch-style (out,in); b: (20,); rand_weight: (20,20).
    Returns a single (64, 20) f32 block (one DMA per kernel call).
    """
    wt = jnp.transpose(w).astype(jnp.float32)                        # (in, out)
    b2 = b.reshape(1, FEAT).astype(jnp.float32)                      # (1, 20)
    rw = rand_weight.astype(jnp.float32)
    w2 = jnp.dot(wt, rw, preferred_element_type=jnp.float32)         # fused weight
    c2 = jnp.dot(b2, rw, preferred_element_type=jnp.float32) + 1.0   # fused bias (+1)

    packed = jnp.zeros((PACK_ROWS, FEAT), jnp.float32)
    packed = packed.at[W2_ROW:W2_ROW + FEAT, :].set(w2)
    packed = packed.at[WT_ROW:WT_ROW + FEAT, :].set(wt)
    packed = packed.at[C2_ROW, :].set(c2[0])
    packed = packed.at[B_ROW, :].set(b2[0])
    return packed


_COST = pl.CostEstimate(
    flops=2 * 2 * BATCH * FEAT * FEAT,                # two (2,20)x(20,20) matmuls
    transcendentals=0,
    bytes_accessed=4 * (BATCH * FEAT + PACK_ROWS * FEAT + 1),
)


def fixed_hidden_mlp(x, packed_params):
    """x: (2, 20) input; packed_params from prepare_params. Returns scalar f32."""
    out = pl.pallas_call(
        fixed_hidden_mlp_kernel,
        out_shape=jax.ShapeDtypeStruct((1,), jnp.float32),
        in_specs=[
            pl.BlockSpec(memory_space=pltpu.MemorySpace.VMEM),   # x
            pl.BlockSpec(memory_space=pltpu.MemorySpace.VMEM),   # packed params
        ],
        out_specs=pl.BlockSpec(memory_space=pltpu.MemorySpace.SMEM),
        cost_estimate=_COST,
    )(x.astype(jnp.float32), packed_params)
    return out[0]


def reference(x, w, b, rand_weight):
    """Faithful (unfused) JAX translation of the PyTorch module."""
    h1 = x @ w.T + b
    h2 = jnp.maximum(h1 @ rand_weight + 1.0, 0.0)
    h3 = h2 @ w.T + b
    h3 = lax.while_loop(
        lambda h: jnp.sum(jnp.abs(h)) > 1.0, lambda h: h / 2.0, h3
    )
    return jnp.sum(h3)


if __name__ == "__main__":
    key = jax.random.PRNGKey(0)
    k_x, k_rw, k_w, k_b = jax.random.split(key, 4)

    # Input X ~ U[0,1), shape (2, 20)  (torch.rand(2, 20))
    x = jax.random.uniform(k_x, (BATCH, FEAT), dtype=jnp.float32)
    # rand_weight ~ U[0,1), shape (20, 20)  (torch.rand((20, 20)))
    rand_weight = jax.random.uniform(k_rw, (FEAT, FEAT), dtype=jnp.float32)
    # nn.Linear(20, 20) default init: U(-1/sqrt(in), 1/sqrt(in))
    bound = 1.0 / jnp.sqrt(jnp.float32(FEAT))
    w = jax.random.uniform(k_w, (FEAT, FEAT), dtype=jnp.float32,
                           minval=-bound, maxval=bound)
    b = jax.random.uniform(k_b, (FEAT,), dtype=jnp.float32,
                           minval=-bound, maxval=bound)

    packed = prepare_params(w, b, rand_weight)   # one-time prep (hoisted)
    out = fixed_hidden_mlp(x, packed)
    out = jax.block_until_ready(out)

    ref = reference(x, w, b, rand_weight)
    # fused-matmul association order differs from the reference by normal rounding
    assert jnp.allclose(out, ref, rtol=1e-4, atol=1e-5), (out, ref)

    print("KERNEL_OK")
</pallas_src>

<mosaic_0001>
module attributes {stable_mosaic.version = 11 : i64} {
  func.func @fixed_hidden_mlp_kernel(%arg0: memref<2x20xf32, #tpu.memory_space<vmem>>, %arg1: memref<64x20xf32, #tpu.memory_space<vmem>>, %arg2: memref<1xf32, #tpu.memory_space<smem>>) attributes {dimension_semantics = [], scalar_prefetch = 0 : i64, scratch_operands = 0 : i64, tpu.core_type = #tpu.core_type<tc>} {
    %c0 = arith.constant 0 : index
    %c0_0 = arith.constant 0 : index
    %0 = vector.load %arg0[%c0, %c0_0] : memref<2x20xf32, #tpu.memory_space<vmem>>, vector<2x20xf32>
    %c0_1 = arith.constant 0 : index
    %c0_2 = arith.constant 0 : index
    %1 = vector.load %arg1[%c0_1, %c0_2] : memref<64x20xf32, #tpu.memory_space<vmem>>, vector<20x20xf32>
    %c24 = arith.constant 24 : index
    %c0_3 = arith.constant 0 : index
    %2 = vector.load %arg1[%c24, %c0_3] : memref<64x20xf32, #tpu.memory_space<vmem>>, vector<20x20xf32>
    %c48 = arith.constant 48 : index
    %c0_4 = arith.constant 0 : index
    %3 = vector.load %arg1[%c48, %c0_4] : memref<64x20xf32, #tpu.memory_space<vmem>>, vector<1x20xf32>
    %c56 = arith.constant 56 : index
    %c0_5 = arith.constant 0 : index
    %4 = vector.load %arg1[%c56, %c0_5] : memref<64x20xf32, #tpu.memory_space<vmem>>, vector<1x20xf32>
    %cst = arith.constant dense<0.000000e+00> : vector<2x20xf32>
    %5 = tpu.matmul %0, %1, %cst {dimension_numbers = #tpu.dot_dimension_numbers<[1], [0], [0], [1], [0, 0, 1, 1], [], []>} : vector<2x20xf32>, vector<20x20xf32>, vector<2x20xf32> -> vector<2x20xf32>
    %6 = vector.broadcast %3 : vector<1x20xf32> to vector<2x20xf32>
    %7 = arith.addf %5, %6 : vector<2x20xf32>
    %cst_6 = arith.constant 0.000000e+00 : f32
    %8 = vector.broadcast %cst_6 : f32 to vector<2x20xf32>
    %9 = arith.maximumf %7, %8 : vector<2x20xf32>
    %cst_7 = arith.constant dense<0.000000e+00> : vector<2x20xf32>
    %10 = tpu.matmul %9, %2, %cst_7 {dimension_numbers = #tpu.dot_dimension_numbers<[1], [0], [0], [1], [0, 0, 1, 1], [], []>} : vector<2x20xf32>, vector<20x20xf32>, vector<2x20xf32> -> vector<2x20xf32>
    %11 = vector.broadcast %4 : vector<1x20xf32> to vector<2x20xf32>
    %12 = arith.addf %10, %11 : vector<2x20xf32>
    %13 = math.absf %12 : vector<2x20xf32>
    %14 = tpu.concatenate %12, %13 in 0 : vector<2x20xf32>, vector<2x20xf32> -> vector<4x20xf32>
    %cst_8 = arith.constant dense<0.000000e+00> : vector<4xf32>
    %15 = vector.multi_reduction <add>, %14, %cst_8 [1] : vector<4x20xf32> to vector<4xf32>
    %16 = vector.shape_cast %15 : vector<4xf32> to vector<4x1xf32>
    %17 = vector.extract_strided_slice %16 {offsets = [0, 0], sizes = [1, 1], strides = [1, 1]} : vector<4x1xf32> to vector<1x1xf32>
    %18 = vector.extract_strided_slice %16 {offsets = [1, 0], sizes = [1, 1], strides = [1, 1]} : vector<4x1xf32> to vector<1x1xf32>
    %19 = arith.addf %17, %18 : vector<1x1xf32>
    %20 = vector.extract_strided_slice %16 {offsets = [2, 0], sizes = [1, 1], strides = [1, 1]} : vector<4x1xf32> to vector<1x1xf32>
    %21 = vector.extract_strided_slice %16 {offsets = [3, 0], sizes = [1, 1], strides = [1, 1]} : vector<4x1xf32> to vector<1x1xf32>
    %22 = arith.addf %20, %21 : vector<1x1xf32>
    %23 = tpu.bitcast %22 : vector<1x1xf32> -> vector<1x1xi32>
    %c23_i32 = arith.constant 23 : i32
    %24 = vector.broadcast %c23_i32 : i32 to vector<1x1xi32>
    %25 = arith.shrsi %23, %24 : vector<1x1xi32>
    %c127_i32 = arith.constant 127 : i32
    %26 = vector.broadcast %c127_i32 : i32 to vector<1x1xi32>
    %27 = arith.subi %25, %26 : vector<1x1xi32>
    %c8388607_i32 = arith.constant 8388607 : i32
    %28 = vector.broadcast %c8388607_i32 : i32 to vector<1x1xi32>
    %29 = arith.andi %23, %28 : vector<1x1xi32>
    %c0_i32 = arith.constant 0 : i32
    %30 = vector.broadcast %c0_i32 : i32 to vector<1x1xi32>
    %31 = arith.cmpi ne, %29, %30 : vector<1x1xi32>
    %32 = arith.extui %31 : vector<1x1xi1> to vector<1x1xi32>
    %cst_9 = arith.constant 1.000000e+00 : f32
    %33 = vector.broadcast %cst_9 : f32 to vector<1x1xf32>
    %34 = arith.cmpf ogt, %22, %33 : vector<1x1xf32>
    %35 = arith.addi %27, %32 : vector<1x1xi32>
    %c0_i32_10 = arith.constant 0 : i32
    %36 = vector.broadcast %c0_i32_10 : i32 to vector<1x1xi32>
    %37 = arith.select %34, %35, %36 : vector<1x1xi1>, vector<1x1xi32>
    %c1_i32 = arith.constant 1 : i32
    %38 = vector.broadcast %c1_i32 : i32 to vector<1x1xi32>
    %39 = arith.shrsi %37, %38 : vector<1x1xi32>
    %40 = arith.subi %37, %39 : vector<1x1xi32>
    %c127_i32_11 = arith.constant 127 : i32
    %41 = vector.broadcast %c127_i32_11 : i32 to vector<1x1xi32>
    %42 = arith.subi %41, %39 : vector<1x1xi32>
    %c23_i32_12 = arith.constant 23 : i32
    %43 = vector.broadcast %c23_i32_12 : i32 to vector<1x1xi32>
    %44 = arith.shli %42, %43 : vector<1x1xi32>
    %45 = tpu.bitcast %44 : vector<1x1xi32> -> vector<1x1xf32>
    %c127_i32_13 = arith.constant 127 : i32
    %46 = vector.broadcast %c127_i32_13 : i32 to vector<1x1xi32>
    %47 = arith.subi %46, %40 : vector<1x1xi32>
    %c23_i32_14 = arith.constant 23 : i32
    %48 = vector.broadcast %c23_i32_14 : i32 to vector<1x1xi32>
    %49 = arith.shli %47, %48 : vector<1x1xi32>
    %50 = tpu.bitcast %49 : vector<1x1xi32> -> vector<1x1xf32>
    %51 = arith.mulf %19, %45 : vector<1x1xf32>
    %52 = arith.mulf %51, %50 : vector<1x1xf32>
    %53 = vector.extract %52[0, 0] : f32 from vector<1x1xf32>
    %c0_15 = arith.constant 0 : index
    %54 = memref.load %arg2[%c0_15] : memref<1xf32, #tpu.memory_space<smem>>
    memref.store %53, %arg2[%c0_15] : memref<1xf32, #tpu.memory_space<smem>>
    return
  }
}

</mosaic_0001>

<llo_original>
// kernel: tpu_custom_call.1
$region0: #{tpu_custom_call.1}
  #allocation0 [shape = 'u32[]', space=smem, size = 0x4, offset = 0x4, fixed_abs, tag = 'smem constant byte address 0x4 - core index']
  #allocation1 [shape = 'u32[144,128]{1,0:T(1,128)}', space=vmem, size = 0x12000, scoped, tag = 'internal scratch']
  %s0 = inlined_call_operand.vmem [shape: f32[2,20], index: 0, kind: input, shape index: {}]
  %s1 = inlined_call_operand.vmem [shape: f32[64,20], index: 1, kind: input, shape index: {}]
  %s2 = inlined_call_operand.hbm [shape: f32[1], index: 2, kind: output, shape index: {}]
  %s3 = sld [smem:[#allocation0]]
  $region18: #{tpu_custom_call.1} parent=0
    _
  %s5 = ssub.s32 1, %s3
  %s6 = scalar_select 0, %s5, %s3
  $region1: #{tpu_custom_call.1} parent=0
    #allocation2 [shape = 'u8[512]{0}', space=smem, size = 0x200, scoped, tag = 'output window, operand 0, single buffered']
    #allocation3 [shape = 's32[1]{0}', space=sflag, size = 0x4, scoped, tag = 'scoped memory for tpu_custom_call.1']
    %7 = vsyncpa [#allocation3], 0
    // Predicated region
    $region2: #{tpu_custom_call.1} parent=1 // pred_check
      _
    $region3: #{tpu_custom_call.1} parent=1 // pred_check_branch
      %9 = sbr.rel (0) target = $region5
    $region4: #{tpu_custom_call.1} parent=1 // pred_region
      _
    $region5: #{tpu_custom_call.1} parent=1 // pred_fallthru
      _
    // Predicated region
    $region6: #{tpu_custom_call.1} parent=1 // pred_check
      _
    $region7: #{tpu_custom_call.1} parent=1 // pred_check_branch
      %11 = sbr.rel (0) target = $region9
    $region8: #{tpu_custom_call.1} parent=1 // pred_region
      _
    $region9: #{tpu_custom_call.1} parent=1 // pred_fallthru
      _
    %v12 = vld [vmem:[%s0] sm:$0x3]
    %v13 = vld [vmem:[%s1] sm:$0xff]
    %v14 = vld [vmem:[%s1 + $0x8] sm:$0xff]
    %v15 = vld [vmem:[%s1 + $0x10] sm:$0xf]
    %v16 = vld [vmem:[%s1 + $0x18] sm:$0xff]
    %v17 = vld [vmem:[%s1 + $0x20] sm:$0xff]
    %v18 = vld [vmem:[%s1 + $0x28] sm:$0xf]
    %v19 = vld [vmem:[%s1 + $0x30] sm:$0x1]
    %v20 = vld [vmem:[%s1 + $0x38] sm:$0x1]
    %v21 = vlaneseq
    %v22 = vshrl.u32 %v21, 7
    %v23 = vsub.s32 0, %v22
    %v24 = vrot.slane %v19, %v23
    %vm25 = vcmask 162816
    %v27 = vsel %vm25, %v12, 0
    %vm29 = vcmask 1043456
    %v31 = vsel %vm29, %v15, 0
    %33 = vmatprep.subr.mxu0 0.0
    %34 = vmatpush1.msra.mxu0 0.0
    %35 = vmatprep.subr.mxu0 0.0
    %36 = vmatpush1.msra.mxu0 0.0
    %37 = vmatprep.subr.mxu0 0.0
    %38 = vmatpush1.msra.mxu0 0.0
    %39 = vmatprep.subr.mxu0 0.0
    %40 = vmatpush1.msra.mxu0 0.0
    %41 = vmatprep.subr.mxu0 0.0
    %42 = vmatpush1.msra.mxu0 0.0
    %43 = vmatprep.subr.mxu0 0.0
    %44 = vmatpush1.msra.mxu0 0.0
    %45 = vmatprep.subr.mxu0 0.0
    %46 = vmatpush1.msra.mxu0 0.0
    %47 = vmatprep.subr.mxu0 0.0
    %48 = vmatpush1.msra.mxu0 0.0
    %49 = vmatprep.subr.mxu0 0.0
    %50 = vmatpush1.msra.mxu0 0.0
    %51 = vmatprep.subr.mxu0 0.0
    %52 = vmatpush1.msra.mxu0 0.0
    %53 = vmatprep.subr.mxu0 0.0
    %54 = vmatpush1.msra.mxu0 0.0
    %55 = vmatprep.subr.mxu0 0.0
    %56 = vmatpush1.msra.mxu0 0.0
    %57 = vmatprep.subr.mxu0 0.0
    %58 = vmatpush1.msra.mxu0 0.0
    %59 = vmatprep.subr.mxu0 0.0
    %60 = vmatpush1.msra.mxu0 %v31
    %61 = vmatprep.subr.mxu0 0.0
    %62 = vmatpush1.msra.mxu0 %v14
    %63 = vmatprep.subr.mxu0 0.0
    %64 = vmatpush1.msra.mxu0 %v13
    %65 = vmatprep.subr.mxu0 0.0
    %66 = vmatpush2.msra.mxu0 0.0
    %67 = vmatprep.subr.mxu0 0.0
    %68 = vmatpush2.msra.mxu0 0.0
    %69 = vmatprep.subr.mxu0 0.0
    %70 = vmatpush2.msra.mxu0 0.0
    %71 = vmatprep.subr.mxu0 0.0
    %72 = vmatpush2.msra.mxu0 0.0
    %73 = vmatprep.subr.mxu0 0.0
    %74 = vmatpush2.msra.mxu0 0.0
    %75 = vmatprep.subr.mxu0 0.0
    %76 = vmatpush2.msra.mxu0 0.0
    %77 = vmatprep.subr.mxu0 0.0
    %78 = vmatpush2.msra.mxu0 0.0
    %79 = vmatprep.subr.mxu0 0.0
    %80 = vmatpush2.msra.mxu0 0.0
    %81 = vmatprep.subr.mxu0 0.0
    %82 = vmatpush2.msra.mxu0 0.0
    %83 = vmatprep.subr.mxu0 0.0
    %84 = vmatpush2.msra.mxu0 0.0
    %85 = vmatprep.subr.mxu0 0.0
    %86 = vmatpush2.msra.mxu0 0.0
    %87 = vmatprep.subr.mxu0 0.0
    %88 = vmatpush2.msra.mxu0 0.0
    %89 = vmatprep.subr.mxu0 0.0
    %90 = vmatpush2.msra.mxu0 0.0
    %91 = vmatprep.subr.mxu0 0.0
    %92 = vmatpush2.msra.mxu0 0.0
    %93 = vmatprep.subr.mxu0 0.0
    %94 = vmatpush2.msra.mxu0 0.0
    %95 = vmatprep.subr.mxu0 0.0
    %96 = vmatpush2.msra.mxu0 0.0
    %97 = vmatprep.mubr.f32.mxu0 0.0
    %98 = vmatmul.mubr.f32.gmra.mxu0 %v27
    %v99 = vpop.f32.mrf.mxu0
    %v100 = vadd.f32 %v24, %v99
    %v101 = vpop.f32.mrf.mxu0
    %102 = vdwg.mxu0
    %v103 = vmax.f32 %v100, 0.0
    %v104 = vlaneseq
    %v105 = vshrl.u32 %v104, 7
    %v106 = vsub.s32 0, %v105
    %v107 = vrot.slane %v20, %v106
    %v109 = vsel %vm25, %v103, 0
    %v112 = vsel %vm29, %v18, 0
    %114 = vmatprep.subr.mxu0 0.0
    %115 = vmatpush1.msra.mxu0 0.0
    %116 = vmatprep.subr.mxu0 0.0
    %117 = vmatpush1.msra.mxu0 0.0
    %118 = vmatprep.subr.mxu0 0.0
    %119 = vmatpush1.msra.mxu0 0.0
    %120 = vmatprep.subr.mxu0 0.0
    %121 = vmatpush1.msra.mxu0 0.0
    %122 = vmatprep.subr.mxu0 0.0
    %123 = vmatpush1.msra.mxu0 0.0
    %124 = vmatprep.subr.mxu0 0.0
    %125 = vmatpush1.msra.mxu0 0.0
    %126 = vmatprep.subr.mxu0 0.0
    %127 = vmatpush1.msra.mxu0 0.0
    %128 = vmatprep.subr.mxu0 0.0
    %129 = vmatpush1.msra.mxu0 0.0
    %130 = vmatprep.subr.mxu0 0.0
    %131 = vmatpush1.msra.mxu0 0.0
    %132 = vmatprep.subr.mxu0 0.0
    %133 = vmatpush1.msra.mxu0 0.0
    %134 = vmatprep.subr.mxu0 0.0
    %135 = vmatpush1.msra.mxu0 0.0
    %136 = vmatprep.subr.mxu0 0.0
    %137 = vmatpush1.msra.mxu0 0.0
    %138 = vmatprep.subr.mxu0 0.0
    %139 = vmatpush1.msra.mxu0 0.0
    %140 = vmatprep.subr.mxu0 0.0
    %141 = vmatpush1.msra.mxu0 %v112
    %142 = vmatprep.subr.mxu0 0.0
    %143 = vmatpush1.msra.mxu0 %v17
    %144 = vmatprep.subr.mxu0 0.0
    %145 = vmatpush1.msra.mxu0 %v16
    %146 = vmatprep.subr.mxu0 0.0
    %147 = vmatpush2.msra.mxu0 0.0
    %148 = vmatprep.subr.mxu0 0.0
    %149 = vmatpush2.msra.mxu0 0.0
    %150 = vmatprep.subr.mxu0 0.0
    %151 = vmatpush2.msra.mxu0 0.0
    %152 = vmatprep.subr.mxu0 0.0
    %153 = vmatpush2.msra.mxu0 0.0
    %154 = vmatprep.subr.mxu0 0.0
    %155 = vmatpush2.msra.mxu0 0.0
    %156 = vmatprep.subr.mxu0 0.0
    %157 = vmatpush2.msra.mxu0 0.0
    %158 = vmatprep.subr.mxu0 0.0
    %159 = vmatpush2.msra.mxu0 0.0
    %160 = vmatprep.subr.mxu0 0.0
    %161 = vmatpush2.msra.mxu0 0.0
    %162 = vmatprep.subr.mxu0 0.0
    %163 = vmatpush2.msra.mxu0 0.0
    %164 = vmatprep.subr.mxu0 0.0
    %165 = vmatpush2.msra.mxu0 0.0
    %166 = vmatprep.subr.mxu0 0.0
    %167 = vmatpush2.msra.mxu0 0.0
    %168 = vmatprep.subr.mxu0 0.0
    %169 = vmatpush2.msra.mxu0 0.0
    %170 = vmatprep.subr.mxu0 0.0
    %171 = vmatpush2.msra.mxu0 0.0
    %172 = vmatprep.subr.mxu0 0.0
    %173 = vmatpush2.msra.mxu0 0.0
    %174 = vmatprep.subr.mxu0 0.0
    %175 = vmatpush2.msra.mxu0 0.0
    %176 = vmatprep.subr.mxu0 0.0
    %177 = vmatpush2.msra.mxu0 0.0
    %178 = vmatprep.mubr.f32.mxu0 0.0
    %179 = vmatmul.mubr.f32.gmra.mxu0 %v109
    %v180 = vpop.f32.mrf.mxu0
    %v181 = vadd.f32 %v107, %v180
    %v182 = vpop.f32.mrf.mxu0
    %183 = vdwg.mxu0
    %v184 = vand.u32 2147483647, %v181
    %v186 = vrot.slane %v184, 6
    %vm188 = vcmask 1041408
    %v189 = vsel %vm188, %v181, %v186
    %vm190 = vcmask 158720
    %v191 = vsel %vm190, %v189, 0.0
    %192 = vadd.xlane.f32.xlu0 %v191
    %v193 = vpop.xlane.xlu0 %192
    %v195 = vrot.slane %v193, 1
    %v197 = vadd.f32 %v193, %v195
    %v199 = vshra.s32 %v197, 23
    %v200 = vsub.s32 %v199, 127
    %v201 = vand.u32 %v197, 8388607
    %vm202 = vcmp.ne.s32.totalorder %v201, 0
    %v203 = vsel %vm202, 1, 0
    %vm204 = vcmp.gt.f32.partialorder %v197, 1.0
    %v205 = vadd.s32 %v200, %v203
    %v206 = vsel %vm204, %v205, 0
    %v207 = vshra.s32 %v206, 1
    %v208 = vsub.s32 %v206, %v207
    %v209 = vsub.s32 127, %v207
    %v210 = vshll.u32 %v209, 23
    %v211 = vsub.s32 127, %v208
    %v212 = vshll.u32 %v211, 23
    %v213 = vrot.slane %v210, 2
    %v215 = vmul.f32 %v197, %v213
    %v216 = vrot.slane %v212, 2
    %v218 = vmul.f32 %v215, %v216
    %s219 = vtos %v218
    %s220 = scalar_lea.smem [#allocation2], 0
    %221 = sst [smem:[%s220]] %s219
    // Predicated region
    $region10: #{tpu_custom_call.1} parent=1 // pred_check
      _
    $region11: #{tpu_custom_call.1} parent=1 // pred_check_branch
      %223 = sbr.rel (0) target = $region13
    $region12: #{tpu_custom_call.1} parent=1 // pred_region
      %s225 = ssub.s32 16, 16
      %226 = vsyncadd [#allocation3], %s225
      %229 = dma.smem_to_hbm [#allocation2], 16, %s2, [#allocation3]
    $region13: #{tpu_custom_call.1} parent=1 // pred_fallthru
      _
    // Predicated region
    $region14: #{tpu_custom_call.1} parent=1 // pred_check
      _
    $region15: #{tpu_custom_call.1} parent=1 // pred_check_branch
      %231 = sbr.rel (0) target = $region17
    $region16: #{tpu_custom_call.1} parent=1 // pred_region
      %232 = dma.done [#allocation3], 16
    $region17: #{tpu_custom_call.1} parent=1 // pred_fallthru
      _
    %233 = sfence
    %234 = vsyncpa [#allocation3], 1

</llo_original>
